<compile_context>
chip_gen: v5e
topology: v5e:2x2
jax: 0.10.0
libtpu: 0.0.40
codegen_flags: <defaults>
</compile_context>

<pallas_src>
import jax
import jax.numpy as jnp
from jax import lax
from jax.experimental import pallas as pl
from jax.experimental.pallas import tpu as pltpu


_NT_DIMS = (((1,), (1,)), ((), ()))   # contract the last dim of both operands

_PER_BUFFER_BUDGET_BYTES = 6 << 20    # hidden block per pipeline buffer; x2 for
                                      # double-buffering = 12 MiB, inside the
                                      # default scoped VMEM on v5e/v6e/v7x.
_MAX_BLOCK_B = 16


def _pick_block_b(batch, seq, hidden, itemsize):
    """Largest divisor of `batch` fitting the VMEM budget; prefers >=2 steps."""
    bytes_per_row = max(seq * hidden * itemsize, 1)
    cap = max(1, min(_MAX_BLOCK_B, _PER_BUFFER_BUDGET_BYTES // bytes_per_row))
    divisors = [d for d in range(1, batch + 1) if batch % d == 0 and d <= cap]
    # Prefer leaving >= 2 grid steps so ("parallel",) can use both TCs (v7x).
    multi_step = [d for d in divisors if batch // d >= 2]
    return max(multi_step) if multi_step else max(divisors)


def _squad_head_kernel(hidden_ref, w_ref, bias_ref, pmask_ref,
                       spos_ref, epos_ref,
                       logits_ref, loss_ref):
    block_b, S, _ = hidden_ref.shape
    g = pl.program_id(0)

    w = w_ref[...]                                   # (2, H), already hidden dtype
    bias = bias_ref[...]                             # (2, 1) f32
    neg_inf = jnp.float32(-jnp.inf)
    out_dtype = logits_ref.dtype

    # Hoisted iotas (JAX does not CSE broadcast_in_dim across loop iterations).
    col = lax.broadcasted_iota(jnp.int32, (2, S), 1)
    row = lax.broadcasted_iota(jnp.int32, (2, 1), 0)

    def per_row(r, carry):
        h_r = hidden_ref[r]                          # (S, H) native dtype
        # Both heads in a single MXU matmul: (2,H) x (S,H)^T -> (2, S) f32 acc.
        logits2 = lax.dot_general(
            w, h_r, _NT_DIMS, preferred_element_type=jnp.float32) + bias

        # masked_fill_(p_mask, -inf): nonzero p_mask marks invalid positions.
        pm_r = pmask_ref[r]                          # (1, S) int8
        logits2 = jnp.where(pm_r != 0, neg_inf, logits2)   # broadcast to (2, S)

        q = logits2.astype(out_dtype)                # torch Linear output dtype
        logits_ref[r] = q                            # one lane-dense (2, S) store

        # nll_loss(log_softmax(logits, dtype=f32), target, reduction='sum'),
        # both heads at once for this batch row.
        lf = q.astype(jnp.float32)
        m = jnp.max(lf, axis=-1, keepdims=True)      # (2, 1)
        z = lf - m
        lse = jnp.log(jnp.sum(jnp.exp(z), axis=-1, keepdims=True))
        ls = z - lse                                 # (2, S) log-softmax

        gb = g * block_b + r                         # global batch row index
        tgt = jnp.where(row == 0, spos_ref[gb], epos_ref[gb])          # (2, 1)
        picked = jnp.sum(jnp.where(col == tgt, ls, 0.0),
                         axis=-1, keepdims=True)     # (2, 1): [ls_s[t_s], ls_e[t_e]]
        loss_ref[r] = -0.5 * jnp.sum(picked, axis=0, keepdims=True)    # (1, 1)
        return carry

    lax.fori_loop(0, block_b, per_row, 0, unroll=True)


def squad_head_forward(hidden_states, w, bias, p_mask,
                       start_positions, end_positions, block_b=None):
    """Returns (start_logits (B,S), end_logits (B,S), total_loss scalar)."""
    B, S, H = hidden_states.shape
    dtype = hidden_states.dtype

    if block_b is None:
        block_b = _pick_block_b(B, S, H, jnp.dtype(dtype).itemsize)
    assert B % block_b == 0, (B, block_b)

    w_c = w.astype(dtype)                              # pre-cast once (wrapper)
    bias2 = bias.reshape(2, 1).astype(jnp.float32)
    pm3 = (p_mask != 0).astype(jnp.int8).reshape(B, 1, S)

    out_shapes = (
        jax.ShapeDtypeStruct((B, 2, S), dtype),        # merged start/end logits
        jax.ShapeDtypeStruct((B, 1, 1), jnp.float32),  # per-batch partial loss
    )

    logits, loss_part = pl.pallas_call(
        _squad_head_kernel,
        out_shape=out_shapes,
        grid=(B // block_b,),
        in_specs=[
            pl.BlockSpec((block_b, S, H), lambda g: (g, 0, 0)),     # hidden slab
            pl.BlockSpec((2, H), lambda g: (0, 0)),                 # W (both heads)
            pl.BlockSpec((2, 1), lambda g: (0, 0)),                 # bias
            pl.BlockSpec((block_b, 1, S), lambda g: (g, 0, 0)),     # p_mask (int8)
            pl.BlockSpec(memory_space=pltpu.MemorySpace.SMEM),      # start_positions
            pl.BlockSpec(memory_space=pltpu.MemorySpace.SMEM),      # end_positions
        ],
        out_specs=(
            pl.BlockSpec((block_b, 2, S), lambda g: (g, 0, 0)),
            pl.BlockSpec((block_b, 1, 1), lambda g: (g, 0, 0)),
        ),
        compiler_params=pltpu.CompilerParams(
            dimension_semantics=("parallel",)),
    )(hidden_states, w_c, bias2, pm3,
      start_positions.astype(jnp.int32), end_positions.astype(jnp.int32))

    start_logits = logits[:, 0, :]
    end_logits = logits[:, 1, :]
    total_loss = jnp.sum(loss_part)    # reduction='sum' over the batch, *0.5 in-kernel
    return start_logits, end_logits, total_loss


def _reference(hidden_states, w, bias, p_mask, start_positions, end_positions):
    """Pure-JAX reference matching the PyTorch SQuADHead forward."""
    def head(k):
        logits = jnp.einsum("bsh,h->bs", hidden_states, w[k]) + bias[k]
        return jnp.where(p_mask != 0, -jnp.inf, logits)

    s_log, e_log = head(0), head(1)

    def nll(logits, targets):
        ls = jax.nn.log_softmax(logits.astype(jnp.float32), axis=-1)
        picked = jnp.take_along_axis(ls, targets[:, None], axis=-1)[:, 0]
        return -jnp.sum(picked)

    loss = 0.5 * (nll(s_log, start_positions) + nll(e_log, end_positions))
    return s_log, e_log, loss


if __name__ == "__main__":
    B, S, H = 4, 8, 32
    key = jax.random.PRNGKey(0)
    k_h, k_ws, k_we = jax.random.split(key, 3)

    hidden_states = jax.random.normal(k_h, (B, S, H), dtype=jnp.float32)

    # Parameter init mirrors nn.Linear(hidden, 1) with normal_(0, 0.02), bias=0.
    w_start = 0.02 * jax.random.normal(k_ws, (H,), dtype=jnp.float32)
    w_end = 0.02 * jax.random.normal(k_we, (H,), dtype=jnp.float32)
    w = jnp.stack([w_start, w_end], axis=0)          # (2, H): row0=start, row1=end
    bias = jnp.zeros((2,), dtype=jnp.float32)

    # p_mask: 1.0 => masked (e.g. CLS at 0, padding at the tail).
    p_mask = jnp.zeros((B, S), dtype=jnp.float32)
    p_mask = p_mask.at[:, 0].set(1.0)
    p_mask = p_mask.at[:, S - 1].set(1.0)

    start_positions = jnp.array([2, 3, 1, 5], dtype=jnp.int32)
    end_positions = jnp.array([4, 5, 3, 6], dtype=jnp.int32)

    s_log, e_log, loss = squad_head_forward(
        hidden_states, w, bias, p_mask, start_positions, end_positions)
    jax.block_until_ready((s_log, e_log, loss))

    s_ref, e_ref, loss_ref_val = _reference(
        hidden_states, w, bias, p_mask, start_positions, end_positions)

    finite_s = jnp.isfinite(s_ref)
    assert bool(jnp.allclose(jnp.where(finite_s, s_log, 0.0),
                             jnp.where(finite_s, s_ref, 0.0), atol=1e-5))
    assert bool(jnp.all(jnp.isneginf(s_log) == jnp.isneginf(s_ref)))
    finite_e = jnp.isfinite(e_ref)
    assert bool(jnp.allclose(jnp.where(finite_e, e_log, 0.0),
                             jnp.where(finite_e, e_ref, 0.0), atol=1e-5))
    assert bool(jnp.all(jnp.isneginf(e_log) == jnp.isneginf(e_ref)))
    assert bool(jnp.allclose(loss, loss_ref_val, atol=1e-5))

    print("KERNEL_OK")
</pallas_src>

<mosaic_0001>
module attributes {stable_mosaic.version = 11 : i64} {
  func.func @_squad_head_kernel(%arg0: i32, %arg1: memref<2x8x32xf32, #tpu.memory_space<vmem>>, %arg2: memref<2x32xf32, #tpu.memory_space<vmem>>, %arg3: memref<2x1xf32, #tpu.memory_space<vmem>>, %arg4: memref<2x1x8xi8, #tpu.memory_space<vmem>>, %arg5: memref<4xi32, #tpu.memory_space<smem>>, %arg6: memref<4xi32, #tpu.memory_space<smem>>, %arg7: memref<2x2x8xf32, #tpu.memory_space<vmem>>, %arg8: memref<2x1x1xf32, #tpu.memory_space<vmem>>) attributes {dimension_semantics = [#tpu.dimension_semantics<parallel>], iteration_bounds = array<i64: 2>, scalar_prefetch = 0 : i64, scratch_operands = 0 : i64, tpu.core_type = #tpu.core_type<tc>, window_params = [{transform_indices = @transform_0, window_bounds = array<i64: 2, 8, 32>}, {pipeline_mode = #tpu.pipeline_mode<synchronous>, transform_indices = @transform_1, window_bounds = array<i64: 2, 32>}, {pipeline_mode = #tpu.pipeline_mode<synchronous>, transform_indices = @transform_2, window_bounds = array<i64: 2, 1>}, {transform_indices = @transform_3, window_bounds = array<i64: 2, 1, 8>}, {transform_indices = @transform_4, window_bounds = array<i64: 4>}, {transform_indices = @transform_5, window_bounds = array<i64: 4>}, {transform_indices = @transform_6, window_bounds = array<i64: 2, 2, 8>}, {transform_indices = @transform_7, window_bounds = array<i64: 2, 1, 1>}]} {
    %c0 = arith.constant 0 : index
    %c0_0 = arith.constant 0 : index
    %0 = vector.load %arg2[%c0, %c0_0] : memref<2x32xf32, #tpu.memory_space<vmem>>, vector<2x32xf32>
    %c0_1 = arith.constant 0 : index
    %c0_2 = arith.constant 0 : index
    %1 = vector.load %arg3[%c0_1, %c0_2] : memref<2x1xf32, #tpu.memory_space<vmem>>, vector<2x1xf32>
    %2 = tpu.iota {dimensions = array<i32: 1>} : vector<2x8xi32>
    %3 = tpu.iota {dimensions = array<i32: 0>} : vector<2x1xi32>
    %cst = arith.constant 0xFF800000 : f32
    %c0_i32 = arith.constant 0 : i32
    %4 = arith.index_cast %c0_i32 : i32 to index
    %c0_3 = arith.constant 0 : index
    %c0_4 = arith.constant 0 : index
    %5 = vector.load %arg1[%4, %c0_3, %c0_4] : memref<2x8x32xf32, #tpu.memory_space<vmem>>, vector<1x8x32xf32>
    %6 = vector.shape_cast %5 : vector<1x8x32xf32> to vector<8x32xf32>
    %cst_5 = arith.constant dense<0.000000e+00> : vector<2x8xf32>
    %7 = tpu.matmul %0, %6, %cst_5 {dimension_numbers = #tpu.dot_dimension_numbers<[1], [1], [0], [0], [0, 0, 1, 0], [], []>} : vector<2x32xf32>, vector<8x32xf32>, vector<2x8xf32> -> vector<2x8xf32>
    %8 = vector.broadcast %1 : vector<2x1xf32> to vector<2x8xf32>
    %9 = arith.addf %7, %8 : vector<2x8xf32>
    %10 = arith.index_cast %c0_i32 : i32 to index
    %c0_6 = arith.constant 0 : index
    %c0_7 = arith.constant 0 : index
    %11 = vector.load %arg4[%10, %c0_6, %c0_7] : memref<2x1x8xi8, #tpu.memory_space<vmem>>, vector<1x1x8xi8>
    %12 = vector.shape_cast %11 : vector<1x1x8xi8> to vector<1x8xi8>
    %c0_i8 = arith.constant 0 : i8
    %13 = vector.broadcast %c0_i8 : i8 to vector<1x8xi8>
    %14 = arith.cmpi ne, %12, %13 : vector<1x8xi8>
    %15 = vector.shape_cast %14 : vector<1x8xi1> to vector<1x8xi1>
    %16 = vector.broadcast %15 : vector<1x8xi1> to vector<2x8xi1>
    %17 = vector.broadcast %cst : f32 to vector<2x8xf32>
    %18 = arith.select %16, %17, %9 : vector<2x8xi1>, vector<2x8xf32>
    %19 = arith.index_cast %c0_i32 : i32 to index
    %c0_8 = arith.constant 0 : index
    %c0_9 = arith.constant 0 : index
    %20 = vector.load %arg7[%19, %c0_8, %c0_9] : memref<2x2x8xf32, #tpu.memory_space<vmem>>, vector<1x2x8xf32>
    %21 = vector.shape_cast %20 : vector<1x2x8xf32> to vector<2x8xf32>
    %22 = vector.shape_cast %18 : vector<2x8xf32> to vector<1x2x8xf32>
    tpu.vector_store %arg7[%19, %c0_8, %c0_9], %22 {strides = array<i32>} : memref<2x2x8xf32, #tpu.memory_space<vmem>>, vector<1x2x8xf32>,
    %cst_10 = arith.constant dense<0xFF800000> : vector<2xf32>
    %23 = vector.multi_reduction <maximumf>, %18, %cst_10 [1] : vector<2x8xf32> to vector<2xf32>
    %24 = vector.shape_cast %23 : vector<2xf32> to vector<2x1xf32>
    %25 = vector.broadcast %24 : vector<2x1xf32> to vector<2x8xf32>
    %26 = arith.subf %18, %25 : vector<2x8xf32>
    %27 = math.exp %26 : vector<2x8xf32>
    %cst_11 = arith.constant dense<0.000000e+00> : vector<2xf32>
    %28 = vector.multi_reduction <add>, %27, %cst_11 [1] : vector<2x8xf32> to vector<2xf32>
    %29 = vector.shape_cast %28 : vector<2xf32> to vector<2x1xf32>
    %30 = math.log %29 : vector<2x1xf32>
    %31 = vector.broadcast %30 : vector<2x1xf32> to vector<2x8xf32>
    %32 = arith.subf %26, %31 : vector<2x8xf32>
    %c2_i32 = arith.constant 2 : i32
    %33 = arith.muli %arg0, %c2_i32 : i32
    %34 = arith.addi %33, %c0_i32 : i32
    %c0_i32_12 = arith.constant 0 : i32
    %35 = vector.broadcast %c0_i32_12 : i32 to vector<2x1xi32>
    %36 = arith.cmpi eq, %3, %35 : vector<2x1xi32>
    %37 = arith.index_cast %34 : i32 to index
    %38 = memref.load %arg5[%37] : memref<4xi32, #tpu.memory_space<smem>>
    %39 = arith.index_cast %34 : i32 to index
    %40 = memref.load %arg6[%39] : memref<4xi32, #tpu.memory_space<smem>>
    %41 = vector.broadcast %38 : i32 to vector<2x1xi32>
    %42 = vector.broadcast %40 : i32 to vector<2x1xi32>
    %43 = arith.select %36, %41, %42 : vector<2x1xi1>, vector<2x1xi32>
    %44 = vector.broadcast %43 : vector<2x1xi32> to vector<2x8xi32>
    %45 = arith.cmpi eq, %2, %44 : vector<2x8xi32>
    %cst_13 = arith.constant 0.000000e+00 : f32
    %46 = vector.broadcast %cst_13 : f32 to vector<2x8xf32>
    %47 = arith.select %45, %32, %46 : vector<2x8xi1>, vector<2x8xf32>
    %cst_14 = arith.constant dense<0.000000e+00> : vector<2xf32>
    %48 = vector.multi_reduction <add>, %47, %cst_14 [1] : vector<2x8xf32> to vector<2xf32>
    %49 = vector.shape_cast %48 : vector<2xf32> to vector<2x1xf32>
    %cst_15 = arith.constant dense<0.000000e+00> : vector<1xf32>
    %50 = vector.multi_reduction <add>, %49, %cst_15 [0] : vector<2x1xf32> to vector<1xf32>
    %51 = vector.shape_cast %50 : vector<1xf32> to vector<1x1xf32>
    %cst_16 = arith.constant -5.000000e-01 : f32
    %52 = vector.broadcast %cst_16 : f32 to vector<1x1xf32>
    %53 = arith.mulf %52, %51 : vector<1x1xf32>
    %54 = arith.index_cast %c0_i32 : i32 to index
    %c0_17 = arith.constant 0 : index
    %c0_18 = arith.constant 0 : index
    %55 = vector.load %arg8[%54, %c0_17, %c0_18] : memref<2x1x1xf32, #tpu.memory_space<vmem>>, vector<1x1x1xf32>
    %56 = vector.shape_cast %55 : vector<1x1x1xf32> to vector<1x1xf32>
    %57 = vector.shape_cast %53 : vector<1x1xf32> to vector<1x1x1xf32>
    tpu.vector_store %arg8[%54, %c0_17, %c0_18], %57 {strides = array<i32>} : memref<2x1x1xf32, #tpu.memory_space<vmem>>, vector<1x1x1xf32>,
    %c1_i32 = arith.constant 1 : i32
    %58 = arith.index_cast %c1_i32 : i32 to index
    %c0_19 = arith.constant 0 : index
    %c0_20 = arith.constant 0 : index
    %59 = vector.load %arg1[%58, %c0_19, %c0_20] : memref<2x8x32xf32, #tpu.memory_space<vmem>>, vector<1x8x32xf32>
    %60 = vector.shape_cast %59 : vector<1x8x32xf32> to vector<8x32xf32>
    %cst_21 = arith.constant dense<0.000000e+00> : vector<2x8xf32>
    %61 = tpu.matmul %0, %60, %cst_21 {dimension_numbers = #tpu.dot_dimension_numbers<[1], [1], [0], [0], [0, 0, 1, 0], [], []>} : vector<2x32xf32>, vector<8x32xf32>, vector<2x8xf32> -> vector<2x8xf32>
    %62 = vector.broadcast %1 : vector<2x1xf32> to vector<2x8xf32>
    %63 = arith.addf %61, %62 : vector<2x8xf32>
    %64 = arith.index_cast %c1_i32 : i32 to index
    %c0_22 = arith.constant 0 : index
    %c0_23 = arith.constant 0 : index
    %65 = vector.load %arg4[%64, %c0_22, %c0_23] : memref<2x1x8xi8, #tpu.memory_space<vmem>>, vector<1x1x8xi8>
    %66 = vector.shape_cast %65 : vector<1x1x8xi8> to vector<1x8xi8>
    %c0_i8_24 = arith.constant 0 : i8
    %67 = vector.broadcast %c0_i8_24 : i8 to vector<1x8xi8>
    %68 = arith.cmpi ne, %66, %67 : vector<1x8xi8>
    %69 = vector.shape_cast %68 : vector<1x8xi1> to vector<1x8xi1>
    %70 = vector.broadcast %69 : vector<1x8xi1> to vector<2x8xi1>
    %71 = vector.broadcast %cst : f32 to vector<2x8xf32>
    %72 = arith.select %70, %71, %63 : vector<2x8xi1>, vector<2x8xf32>
    %73 = arith.index_cast %c1_i32 : i32 to index
    %c0_25 = arith.constant 0 : index
    %c0_26 = arith.constant 0 : index
    %74 = vector.load %arg7[%73, %c0_25, %c0_26] : memref<2x2x8xf32, #tpu.memory_space<vmem>>, vector<1x2x8xf32>
    %75 = vector.shape_cast %74 : vector<1x2x8xf32> to vector<2x8xf32>
    %76 = vector.shape_cast %72 : vector<2x8xf32> to vector<1x2x8xf32>
    tpu.vector_store %arg7[%73, %c0_25, %c0_26], %76 {strides = array<i32>} : memref<2x2x8xf32, #tpu.memory_space<vmem>>, vector<1x2x8xf32>,
    %cst_27 = arith.constant dense<0xFF800000> : vector<2xf32>
    %77 = vector.multi_reduction <maximumf>, %72, %cst_27 [1] : vector<2x8xf32> to vector<2xf32>
    %78 = vector.shape_cast %77 : vector<2xf32> to vector<2x1xf32>
    %79 = vector.broadcast %78 : vector<2x1xf32> to vector<2x8xf32>
    %80 = arith.subf %72, %79 : vector<2x8xf32>
    %81 = math.exp %80 : vector<2x8xf32>
    %cst_28 = arith.constant dense<0.000000e+00> : vector<2xf32>
    %82 = vector.multi_reduction <add>, %81, %cst_28 [1] : vector<2x8xf32> to vector<2xf32>
    %83 = vector.shape_cast %82 : vector<2xf32> to vector<2x1xf32>
    %84 = math.log %83 : vector<2x1xf32>
    %85 = vector.broadcast %84 : vector<2x1xf32> to vector<2x8xf32>
    %86 = arith.subf %80, %85 : vector<2x8xf32>
    %c2_i32_29 = arith.constant 2 : i32
    %87 = arith.muli %arg0, %c2_i32_29 : i32
    %88 = arith.addi %87, %c1_i32 : i32
    %c0_i32_30 = arith.constant 0 : i32
    %89 = vector.broadcast %c0_i32_30 : i32 to vector<2x1xi32>
    %90 = arith.cmpi eq, %3, %89 : vector<2x1xi32>
    %91 = arith.index_cast %88 : i32 to index
    %92 = memref.load %arg5[%91] : memref<4xi32, #tpu.memory_space<smem>>
    %93 = arith.index_cast %88 : i32 to index
    %94 = memref.load %arg6[%93] : memref<4xi32, #tpu.memory_space<smem>>
    %95 = vector.broadcast %92 : i32 to vector<2x1xi32>
    %96 = vector.broadcast %94 : i32 to vector<2x1xi32>
    %97 = arith.select %90, %95, %96 : vector<2x1xi1>, vector<2x1xi32>
    %98 = vector.broadcast %97 : vector<2x1xi32> to vector<2x8xi32>
    %99 = arith.cmpi eq, %2, %98 : vector<2x8xi32>
    %cst_31 = arith.constant 0.000000e+00 : f32
    %100 = vector.broadcast %cst_31 : f32 to vector<2x8xf32>
    %101 = arith.select %99, %86, %100 : vector<2x8xi1>, vector<2x8xf32>
    %cst_32 = arith.constant dense<0.000000e+00> : vector<2xf32>
    %102 = vector.multi_reduction <add>, %101, %cst_32 [1] : vector<2x8xf32> to vector<2xf32>
    %103 = vector.shape_cast %102 : vector<2xf32> to vector<2x1xf32>
    %cst_33 = arith.constant dense<0.000000e+00> : vector<1xf32>
    %104 = vector.multi_reduction <add>, %103, %cst_33 [0] : vector<2x1xf32> to vector<1xf32>
    %105 = vector.shape_cast %104 : vector<1xf32> to vector<1x1xf32>
    %cst_34 = arith.constant -5.000000e-01 : f32
    %106 = vector.broadcast %cst_34 : f32 to vector<1x1xf32>
    %107 = arith.mulf %106, %105 : vector<1x1xf32>
    %108 = arith.index_cast %c1_i32 : i32 to index
    %c0_35 = arith.constant 0 : index
    %c0_36 = arith.constant 0 : index
    %109 = vector.load %arg8[%108, %c0_35, %c0_36] : memref<2x1x1xf32, #tpu.memory_space<vmem>>, vector<1x1x1xf32>
    %110 = vector.shape_cast %109 : vector<1x1x1xf32> to vector<1x1xf32>
    %111 = vector.shape_cast %107 : vector<1x1xf32> to vector<1x1x1xf32>
    tpu.vector_store %arg8[%108, %c0_35, %c0_36], %111 {strides = array<i32>} : memref<2x1x1xf32, #tpu.memory_space<vmem>>, vector<1x1x1xf32>,
    %c2_i32_37 = arith.constant 2 : i32
    return
  }
  func.func @transform_0(%arg0: i32) -> (i32, i32, i32) {
    %c0_i32 = arith.constant 0 : i32
    %c0_i32_0 = arith.constant 0 : i32
    %c0_i32_1 = arith.constant 0 : i32
    return %arg0, %c0_i32, %c0_i32_0 : i32, i32, i32
  }
  func.func @transform_1(%arg0: i32) -> (i32, i32) {
    %c0_i32 = arith.constant 0 : i32
    %c0_i32_0 = arith.constant 0 : i32
    %c0_i32_1 = arith.constant 0 : i32
    return %c0_i32, %c0_i32_0 : i32, i32
  }
  func.func @transform_2(%arg0: i32) -> (i32, i32) {
    %c0_i32 = arith.constant 0 : i32
    %c0_i32_0 = arith.constant 0 : i32
    %c0_i32_1 = arith.constant 0 : i32
    return %c0_i32, %c0_i32_0 : i32, i32
  }
  func.func @transform_3(%arg0: i32) -> (i32, i32, i32) {
    %c0_i32 = arith.constant 0 : i32
    %c0_i32_0 = arith.constant 0 : i32
    %c0_i32_1 = arith.constant 0 : i32
    return %arg0, %c0_i32, %c0_i32_0 : i32, i32, i32
  }
  func.func @transform_4(%arg0: i32) -> i32 {
    %c0_i32 = arith.constant 0 : i32
    %c0_i32_0 = arith.constant 0 : i32
    return %c0_i32 : i32
  }
  func.func @transform_5(%arg0: i32) -> i32 {
    %c0_i32 = arith.constant 0 : i32
    %c0_i32_0 = arith.constant 0 : i32
    return %c0_i32 : i32
  }
  func.func @transform_6(%arg0: i32) -> (i32, i32, i32) {
    %c0_i32 = arith.constant 0 : i32
    %c0_i32_0 = arith.constant 0 : i32
    %c0_i32_1 = arith.constant 0 : i32
    return %arg0, %c0_i32, %c0_i32_0 : i32, i32, i32
  }
  func.func @transform_7(%arg0: i32) -> (i32, i32, i32) {
    %c0_i32 = arith.constant 0 : i32
    %c0_i32_0 = arith.constant 0 : i32
    %c0_i32_1 = arith.constant 0 : i32
    return %arg0, %c0_i32, %c0_i32_0 : i32, i32, i32
  }
}

</mosaic_0001>

<llo_original>
// kernel: tpu_custom_call.1
$region0: #{tpu_custom_call.1}
  #allocation0 [shape = 'u32[]', space=smem, size = 0x4, offset = 0x4, fixed_abs, tag = 'smem constant byte address 0x4 - core index']
  #allocation1 [shape = 'u32[72,128]{1,0:T(1,128)}', space=vmem, size = 0x9000, scoped, tag = 'internal scratch']
  %s0 = inlined_call_operand.hbm [shape: f32[4,8,32], index: 0, kind: input, shape index: {}]
  %s1 = inlined_call_operand.vmem [shape: f32[2,32], index: 1, kind: input, shape index: {}]
  %s2 = inlined_call_operand.vmem [shape: f32[2,1], index: 2, kind: input, shape index: {}]
  %s3 = inlined_call_operand.vmem [shape: s8[4,1,8], index: 3, kind: input, shape index: {}]
  %s4 = inlined_call_operand.vmem [shape: s32[4], index: 4, kind: input, shape index: {}]
  %s5 = inlined_call_operand.vmem [shape: s32[4], index: 5, kind: input, shape index: {}]
  %s6 = inlined_call_operand.hbm [shape: f32[4,2,8], index: 6, kind: output, shape index: {0}]
  %s7 = inlined_call_operand.vmem [shape: f32[4,1,1], index: 7, kind: output, shape index: {1}]
  %8 = xla_tuple %s6, %s7
  %s9 = sld [smem:[#allocation0]]
  $region77: #{tpu_custom_call.1} parent=0
    _
  %s11 = ssub.s32 1, %s9
  %s12 = scalar_select 0, %s11, %s9
  $region1: #{tpu_custom_call.1} parent=0
    #allocation2 [shape = 'u8[16384]{0}', space=vmem, size = 0x4000, scoped, tag = 'input window, operand 0']
    #allocation3 [shape = 's32[2]{0}', space=sflag, size = 0x8, scoped, tag = 'scoped memory for tpu_custom_call.1']
    #allocation4 [shape = 's32[2]{0}', space=sflag, size = 0x8, scoped, tag = 'scoped memory for tpu_custom_call.1']
    #allocation5 [shape = 's32[2]{0}', space=sflag, size = 0x8, scoped, tag = 'scoped memory for tpu_custom_call.1']
    #allocation6 [shape = 'u8[512]{0}', space=smem, size = 0x200, scoped, tag = 'input window, operand 4, single buffered']
    #allocation7 [shape = 'u8[512]{0}', space=smem, size = 0x200, scoped, tag = 'input window, operand 5, single buffered']
    #allocation8 [shape = 's32[1]{0}', space=sflag, size = 0x4, scoped, tag = 'scoped memory for tpu_custom_call.1']
    #allocation9 [shape = 'u8[4096]{0}', space=vmem, size = 0x1000, scoped, tag = 'output window, operand 0']
    %13 = vsyncpa [#allocation3], 0
    %s14 = scalar_lea.sflag [#allocation3], 1
    %15 = vsyncpa %s14, 0
    %16 = vsyncpa [#allocation5], 0
    %17 = vsyncpa [#allocation8], 0
    %18 = vsyncpa [#allocation4], 0
    %s19 = scalar_lea.sflag [#allocation4], 1
    %20 = vsyncpa %s19, 0
    loop: start=0, step=1, limit=4
    $region2: #{tpu_custom_call.1} parent=1 // loop_pre_header
      _
    $region3: #{tpu_custom_call.1} parent=1 // loop_header
      %s22 = sphi 0, %s26
      %p23 = scmp.ge.s32.totalorder %s22, 4
      %s32 = sphi 0, %s34
      %s35 = sphi 0, %s32
      %s36 = sphi 0, %s35
      %s52 = sphi 0, %s36
      %s56 = sphi 0, %s56
      %s58 = sphi 0, %s56
      %s59 = sphi 0, %s58
      %s73 = sphi 0, %s59
      %s77 = sphi 0, %s77
      %s79 = sphi 0, %s77
      %s80 = sphi 0, %s79
      %s94 = sphi 0, %s80
      %s100 = sphi 0, %s102
      %s103 = sphi 0, %s100
      %s104 = sphi 0, %s103
      %s120 = sphi 0, %s104
      %s124 = sphi 0, %s124
      %s126 = sphi 0, %s124
      %s127 = sphi 0, %s126
      %s141 = sphi 0, %s127
      %s145 = sphi 0, %s145
      %s147 = sphi 0, %s145
      %s148 = sphi 0, %s147
      %s162 = sphi 0, %s148
      %s168 = sphi 0, %s170
      %s171 = sphi 0, %s168
      %s172 = sphi 0, %s171
      %s188 = sphi 0, %s172
      %s194 = sphi 0, %s196
      %s197 = sphi 0, %s194
      %s198 = sphi 0, %s197
      %s214 = sphi 0, %s198
    $region4: #{tpu_custom_call.1} parent=1 // loop_header_branch
      %25 = sbr.rel (%p23) target = $region8
    $region5: #{tpu_custom_call.1} parent=1 // loop_body
      %s27 = ssub.s32 %s22, 1
      %s28 = ssub.s32 %s22, 2
      %s29 = sadd.s32 %s22, 1
      %s30 = ssub.s32 %s22, %s29
      %p31 = scmp.eq.s32.totalorder %s30, 0
      %s33 = sadd.s32 %s32, 1
      %s34 = scalar_select %p31, %s32, %s33
      %p37 = pneg %p31
      %p38 = scmp.eq.s32.totalorder %s22, 1
      %p39 = por %p37, %p38
      %p40 = scmp.ne.s32.totalorder %s32, %s35
      %p41 = scmp.eq.s32.totalorder %s22, 0
      %p42 = por %p40, %p41
      %p43 = scmp.ne.s32.totalorder %s32, %s35
      %p44 = scmp.eq.s32.totalorder %s27, 1
      %p45 = por %p43, %p44
      %p46 = scmp.ne.s32.totalorder %s35, %s36
      %p47 = scmp.eq.s32.totalorder %s27, 0
      %p48 = por %p46, %p47
      %p49 = scmp.ne.s32.totalorder %s35, %s36
      %p50 = scmp.eq.s32.totalorder %s28, 1
      %p51 = por %p49, %p50
      %p53 = scmp.ne.s32.totalorder %s36, %s52
      %p54 = scmp.eq.s32.totalorder %s28, 0
      %p55 = por %p53, %p54
      %s57 = sadd.s32 %s56, 1
      %p60 = scmp.eq.s32.totalorder %s22, 1
      %p61 = scmp.ne.s32.totalorder %s56, %s58
      %p62 = scmp.eq.s32.totalorder %s22, 0
      %p63 = por %p61, %p62
      %p64 = scmp.ne.s32.totalorder %s56, %s58
      %p65 = scmp.eq.s32.totalorder %s27, 1
      %p66 = por %p64, %p65
      %p67 = scmp.ne.s32.totalorder %s58, %s59
      %p68 = scmp.eq.s32.totalorder %s27, 0
      %p69 = por %p67, %p68
      %p70 = scmp.ne.s32.totalorder %s58, %s59
      %p71 = scmp.eq.s32.totalorder %s28, 1
      %p72 = por %p70, %p71
      %p74 = scmp.ne.s32.totalorder %s59, %s73
      %p75 = scmp.eq.s32.totalorder %s28, 0
      %p76 = por %p74, %p75
      %s78 = sadd.s32 %s77, 1
      %p81 = scmp.eq.s32.totalorder %s22, 1
      %p82 = scmp.ne.s32.totalorder %s77, %s79
      %p83 = scmp.eq.s32.totalorder %s22, 0
      %p84 = por %p82, %p83
      %p85 = scmp.ne.s32.totalorder %s77, %s79
      %p86 = scmp.eq.s32.totalorder %s27, 1
      %p87 = por %p85, %p86
      %p88 = scmp.ne.s32.totalorder %s79, %s80
      %p89 = scmp.eq.s32.totalorder %s27, 0
      %p90 = por %p88, %p89
      %p91 = scmp.ne.s32.totalorder %s79, %s80
      %p92 = scmp.eq.s32.totalorder %s28, 1
      %p93 = por %p91, %p92
      %p95 = scmp.ne.s32.totalorder %s80, %s94
      %p96 = scmp.eq.s32.totalorder %s28, 0
      %p97 = por %p95, %p96
      %s98 = ssub.s32 %s22, %s29
      %p99 = scmp.eq.s32.totalorder %s98, 0
      %s101 = sadd.s32 %s100, 1
      %s102 = scalar_select %p99, %s100, %s101
      %p105 = pneg %p99
      %p106 = scmp.eq.s32.totalorder %s22, 1
      %p107 = por %p105, %p106
      %p108 = scmp.ne.s32.totalorder %s100, %s103
      %p109 = scmp.eq.s32.totalorder %s22, 0
      %p110 = por %p108, %p109
      %p111 = scmp.ne.s32.totalorder %s100, %s103
      %p112 = scmp.eq.s32.totalorder %s27, 1
      %p113 = por %p111, %p112
      %p114 = scmp.ne.s32.totalorder %s103, %s104
      %p115 = scmp.eq.s32.totalorder %s27, 0
      %p116 = por %p114, %p115
      %p117 = scmp.ne.s32.totalorder %s103, %s104
      %p118 = scmp.eq.s32.totalorder %s28, 1
      %p119 = por %p117, %p118
      %p121 = scmp.ne.s32.totalorder %s104, %s120
      %p122 = scmp.eq.s32.totalorder %s28, 0
      %p123 = por %p121, %p122
      %s125 = sadd.s32 %s124, 1
      %p128 = scmp.eq.s32.totalorder %s22, 1
      %p129 = scmp.ne.s32.totalorder %s124, %s126
      %p130 = scmp.eq.s32.totalorder %s22, 0
      %p131 = por %p129, %p130
      %p132 = scmp.ne.s32.totalorder %s124, %s126
      %p133 = scmp.eq.s32.totalorder %s27, 1
      %p134 = por %p132, %p133
      %p135 = scmp.ne.s32.totalorder %s126, %s127
      %p136 = scmp.eq.s32.totalorder %s27, 0
      %p137 = por %p135, %p136
      %p138 = scmp.ne.s32.totalorder %s126, %s127
      %p139 = scmp.eq.s32.totalorder %s28, 1
      %p140 = por %p138, %p139
      %p142 = scmp.ne.s32.totalorder %s127, %s141
      %p143 = scmp.eq.s32.totalorder %s28, 0
      %p144 = por %p142, %p143
      %s146 = sadd.s32 %s145, 1
      %p149 = scmp.eq.s32.totalorder %s22, 1
      %p150 = scmp.ne.s32.totalorder %s145, %s147
      %p151 = scmp.eq.s32.totalorder %s22, 0
      %p152 = por %p150, %p151
      %p153 = scmp.ne.s32.totalorder %s145, %s147
      %p154 = scmp.eq.s32.totalorder %s27, 1
      %p155 = por %p153, %p154
      %p156 = scmp.ne.s32.totalorder %s147, %s148
      %p157 = scmp.eq.s32.totalorder %s27, 0
      %p158 = por %p156, %p157
      %p159 = scmp.ne.s32.totalorder %s147, %s148
      %p160 = scmp.eq.s32.totalorder %s28, 1
      %p161 = por %p159, %p160
      %p163 = scmp.ne.s32.totalorder %s148, %s162
      %p164 = scmp.eq.s32.totalorder %s28, 0
      %p165 = por %p163, %p164
      %s166 = ssub.s32 %s22, %s29
      %p167 = scmp.eq.s32.totalorder %s166, 0
      %s169 = sadd.s32 %s168, 1
      %s170 = scalar_select %p167, %s168, %s169
      %p173 = pneg %p167
      %p174 = scmp.eq.s32.totalorder %s22, 1
      %p175 = por %p173, %p174
      %p176 = scmp.ne.s32.totalorder %s168, %s171
      %p177 = scmp.eq.s32.totalorder %s22, 0
      %p178 = por %p176, %p177
      %p179 = scmp.ne.s32.totalorder %s168, %s171
      %p180 = scmp.eq.s32.totalorder %s27, 1
      %p181 = por %p179, %p180
      %p182 = scmp.ne.s32.totalorder %s171, %s172
      %p183 = scmp.eq.s32.totalorder %s27, 0
      %p184 = por %p182, %p183
      %p185 = scmp.ne.s32.totalorder %s171, %s172
      %p186 = scmp.eq.s32.totalorder %s28, 1
      %p187 = por %p185, %p186
      %p189 = scmp.ne.s32.totalorder %s172, %s188
      %p190 = scmp.eq.s32.totalorder %s28, 0
      %p191 = por %p189, %p190
      %s192 = ssub.s32 %s22, %s29
      %p193 = scmp.eq.s32.totalorder %s192, 0
      %s195 = sadd.s32 %s194, 1
      %s196 = scalar_select %p193, %s194, %s195
      %p199 = pneg %p193
      %p200 = scmp.eq.s32.totalorder %s22, 1
      %p201 = por %p199, %p200
      %p202 = scmp.ne.s32.totalorder %s194, %s197
      %p203 = scmp.eq.s32.totalorder %s22, 0
      %p204 = por %p202, %p203
      %p205 = scmp.ne.s32.totalorder %s194, %s197
      %p206 = scmp.eq.s32.totalorder %s27, 1
      %p207 = por %p205, %p206
      %p208 = scmp.ne.s32.totalorder %s197, %s198
      %p209 = scmp.eq.s32.totalorder %s27, 0
      %p210 = por %p208, %p209
      %p211 = scmp.ne.s32.totalorder %s197, %s198
      %p212 = scmp.eq.s32.totalorder %s28, 1
      %p213 = por %p211, %p212
      %p215 = scmp.ne.s32.totalorder %s198, %s214
      %p216 = scmp.eq.s32.totalorder %s28, 0
      %p217 = por %p215, %p216
      %p218 = scmp.le.s32.totalorder 1, %s22
      %p219 = scmp.lt.s32.totalorder %s22, 3
      %p220 = pnand %p218, %p219
      %p221 = pneg %p220
      // Predicated region
      $region9: #{tpu_custom_call.1} parent=5 // pred_check
        _
      $region10: #{tpu_custom_call.1} parent=5 // pred_check_branch
        %223 = sbr.rel (%p220) target = $region12
      $region11: #{tpu_custom_call.1} parent=5 // pred_region
        %s224 = ssub.s32 %s22, 1
        // Predicated region
        $region13: #{tpu_custom_call.1} parent=11 // pred_check
          %p225 = pneg %p69
        $region14: #{tpu_custom_call.1} parent=11 // pred_check_branch
          %227 = sbr.rel (%p225) target = $region16
        $region15: #{tpu_custom_call.1} parent=11 // pred_region
          _
        $region16: #{tpu_custom_call.1} parent=11 // pred_fallthru
          _
        // Predicated region
        $region17: #{tpu_custom_call.1} parent=11 // pred_check
          %p228 = pneg %p90
        $region18: #{tpu_custom_call.1} parent=11 // pred_check_branch
          %230 = sbr.rel (%p228) target = $region20
        $region19: #{tpu_custom_call.1} parent=11 // pred_region
          _
        $region20: #{tpu_custom_call.1} parent=11 // pred_fallthru
          _
        // Predicated region
        $region21: #{tpu_custom_call.1} parent=11 // pred_check
          %p231 = pneg %p137
        $region22: #{tpu_custom_call.1} parent=11 // pred_check_branch
          %233 = sbr.rel (%p231) target = $region24
        $region23: #{tpu_custom_call.1} parent=11 // pred_region
          %235 = vsyncadd [#allocation5], 0
          %s237 = sshll.u32 %s4, 4
          %s238 = int_to_ptr.vmem [resolvable:$true] %s237
          %240 = dma.vmem_to_smem %s238, 16, [#allocation6], [#allocation5]
        $region24: #{tpu_custom_call.1} parent=11 // pred_fallthru
          _
        // Predicated region
        $region25: #{tpu_custom_call.1} parent=11 // pred_check
          %p241 = pneg %p158
        $region26: #{tpu_custom_call.1} parent=11 // pred_check_branch
          %243 = sbr.rel (%p241) target = $region28
        $region27: #{tpu_custom_call.1} parent=11 // pred_region
          %245 = vsyncadd [#allocation8], 0
          %s247 = sshll.u32 %s5, 4
          %s248 = int_to_ptr.vmem [resolvable:$true] %s247
          %250 = dma.vmem_to_smem %s248, 16, [#allocation7], [#allocation8]
        $region28: #{tpu_custom_call.1} parent=11 // pred_fallthru
          _
      $region12: #{tpu_custom_call.1} parent=5 // pred_fallthru
        _
      %p251 = scmp.lt.s32.totalorder %s22, 2
      // Predicated region
      $region29: #{tpu_custom_call.1} parent=5 // pred_check
        %p252 = pneg %p251
      $region30: #{tpu_custom_call.1} parent=5 // pred_check_branch
        %254 = sbr.rel (%p252) target = $region32
      $region31: #{tpu_custom_call.1} parent=5 // pred_region
        // Predicated region
        $region33: #{tpu_custom_call.1} parent=31 // pred_check
          %p255 = pneg %p42
        $region34: #{tpu_custom_call.1} parent=31 // pred_check_branch
          %257 = sbr.rel (%p255) target = $region36
        $region35: #{tpu_custom_call.1} parent=31 // pred_region
          %s258 = sand.u32 %s32, 1
          %s259 = scalar_lea.sflag [#allocation3], %s258
          %s260 = sand.u32 %s32, 1
          %s261 = smul.addr %s260, 16
          %s262 = scalar_lea.vmem [#allocation2], %s261
          %s263 = smul.u32 2, %s22
          %265 = vsyncadd %s259, 0
          %s266 = smul.addr %s263, 8
          %s267 = scalar_lea.hbm %s0, %s266
          %s268 = sshll.u32 %s267, 4
          %s269 = int_to_ptr.hbm [resolvable:$true] %s268
          %s270 = sshll.u32 %s262, 4
          %s271 = int_to_ptr.vmem [resolvable:$true] %s270
          %276 = dma.hbm_to_vmem [thread:$0]  %s269, 256, %s271, %s259, 128, 128, 8
        $region36: #{tpu_custom_call.1} parent=31 // pred_fallthru
          _
        // Predicated region
        $region37: #{tpu_custom_call.1} parent=31 // pred_check
          %p277 = pneg %p110
        $region38: #{tpu_custom_call.1} parent=31 // pred_check_branch
          %279 = sbr.rel (%p277) target = $region40
        $region39: #{tpu_custom_call.1} parent=31 // pred_region
          %s280 = smul.u32 2, %s22
          %p281 = scmp.lt.s32.totalorder %s280, 3
          %s282 = scalar_select %p281, %s280, 3
          %s283 = scalar_lea.vmem %s3, %s282
          %s284 = smul.u32 2, %s22
        $region40: #{tpu_custom_call.1} parent=31 // pred_fallthru
          _
      $region32: #{tpu_custom_call.1} parent=5 // pred_fallthru
        _
      %p285 = scmp.le.s32.totalorder 1, %s22
      %p286 = scmp.lt.s32.totalorder %s22, 3
      %p287 = pnand %p285, %p286
      %p288 = pneg %p287
      // Predicated region
      $region41: #{tpu_custom_call.1} parent=5 // pred_check
        _
      $region42: #{tpu_custom_call.1} parent=5 // pred_check_branch
        %290 = sbr.rel (%p287) target = $region44
      $region43: #{tpu_custom_call.1} parent=5 // pred_region
        %s291 = ssub.s32 %s22, 1
        %s292 = sand.u32 %s35, 1
        %s293 = scalar_lea.sflag [#allocation3], %s292
        %s294 = sand.u32 %s35, 1
        %s295 = smul.addr %s294, 16
        %s296 = scalar_lea.vmem [#allocation2], %s295
        // Predicated region
        $region45: #{tpu_custom_call.1} parent=43 // pred_check
          %p297 = pneg %p48
        $region46: #{tpu_custom_call.1} parent=43 // pred_check_branch
          %299 = sbr.rel (%p297) target = $region48
        $region47: #{tpu_custom_call.1} parent=43 // pred_region
          %301 = dma.done %s293, 256
        $region48: #{tpu_custom_call.1} parent=43 // pred_fallthru
          _
        // Predicated region
        $region49: #{tpu_custom_call.1} parent=43 // pred_check
          %p302 = pneg %p137
        $region50: #{tpu_custom_call.1} parent=43 // pred_check_branch
          %304 = sbr.rel (%p302) target = $region52
        $region51: #{tpu_custom_call.1} parent=43 // pred_region
          %306 = dma.done [#allocation5], 16
        $region52: #{tpu_custom_call.1} parent=43 // pred_fallthru
          _
        // Predicated region
        $region53: #{tpu_custom_call.1} parent=43 // pred_check
          %p307 = pneg %p158
        $region54: #{tpu_custom_call.1} parent=43 // pred_check_branch
          %309 = sbr.rel (%p307) target = $region56
        $region55: #{tpu_custom_call.1} parent=43 // pred_region
          %311 = dma.done [#allocation8], 16
        $region56: #{tpu_custom_call.1} parent=43 // pred_fallthru
          _
        %312 = sfence
        %s313 = sand.u32 %s35, 1
        %s314 = scalar_lea.sflag [#allocation3], %s313
        %s315 = sand.u32 %s35, 1
        %s316 = smul.addr %s315, 16
        %s317 = scalar_lea.vmem [#allocation2], %s316
        %p318 = pneg %p48
        %p319 = pneg %p45
        %p320 = pneg %p69
        %p321 = pneg %p66
        %p322 = pneg %p90
        %p323 = pneg %p87
        %s324 = smul.u32 2, %s27
        %p325 = scmp.lt.s32.totalorder %s324, 3
        %s326 = scalar_select %p325, %s324, 3
        %s327 = scalar_lea.vmem %s3, %s326
        %p328 = pneg %p116
        %p329 = pneg %p113
        %p330 = pneg %p137
        %p331 = pneg %p134
        %p332 = pneg %p158
        %p333 = pneg %p155
        %p334 = pneg %p184
        %p335 = pneg %p181
        %s336 = sand.u32 %s171, 1
        %s337 = scalar_lea.sflag [#allocation4], %s336
        %s338 = sand.u32 %s171, 1
        %s339 = smul.addr %s338, 4
        %s340 = scalar_lea.vmem [#allocation9], %s339
        %p341 = pneg %p210
        %p342 = pneg %p207
        %s343 = smul.u32 2, %s27
        %p344 = scmp.lt.s32.totalorder %s343, 3
        %s345 = scalar_select %p344, %s343, 3
        %s346 = scalar_lea.vmem %s7, %s345
        %s347 = smul.u32 2, %s27
        %s348 = smul.u32 2, %s27
        %p349 = scmp.lt.s32.totalorder %s348, 3
        %s350 = scalar_select %p349, %s348, 3
        %s351 = scalar_lea.vmem %s3, %s350
        %s352 = smul.u32 2, %s27
        %s353 = smul.u32 2, %s27
        %s354 = smul.u32 2, %s27
        %p355 = scmp.lt.s32.totalorder %s354, 3
        %s356 = scalar_select %p355, %s354, 3
        %s357 = scalar_lea.vmem %s7, %s356
        %s358 = smul.u32 2, %s27
        %v361 = vld [vmem:[%s1] sm:$0x3]
        %v362 = vld [vmem:[%s2] sm:$0x3]
        %v363 = vlaneseq
        %v364 = vand.u32 %v363, 127
        %v365 = vlaneseq
        %v366 = vshrl.u32 %v365, 7
        %v367 = vld [vmem:[%s296] sm:$0xff]
        %369 = vset.pattern.permute.xlu0 0
        %370 = vperm.xlu0 %369, %v362
        %v371 = vpop.permute.xlu0 %370
        %vm373 = vcmask 261120
        %v375 = vsel %vm373, %v361, 0
        %v378 = vsel %vm373, %v367, 0
        %380 = vmatpush.xpose.msra.mxu0 0.0
        %381 = vmatpush.xpose.msra.mxu0 0.0
        %382 = vmatpush.xpose.msra.mxu0 0.0
        %383 = vmatpush.xpose.msra.mxu0 0.0
        %384 = vmatpush.xpose.msra.mxu0 0.0
        %385 = vmatpush.xpose.msra.mxu0 0.0
        %386 = vmatpush.xpose.msra.mxu0 0.0
        %387 = vmatpush.xpose.msra.mxu0 0.0
        %388 = vmatpush.xpose.msra.mxu0 0.0
        %389 = vmatpush.xpose.msra.mxu0 0.0
        %390 = vmatpush.xpose.msra.mxu0 0.0
        %391 = vmatpush.xpose.msra.mxu0 0.0
        %392 = vmatpush.xpose.msra.mxu0 0.0
        %393 = vmatpush.xpose.msra.mxu0 0.0
        %394 = vmatpush.xpose.msra.mxu0 0.0
        %395 = vmatpush.xpose.msra.mxu0 %v378
        %396 = vmatmul.f32.gmra.mxu0 %v375
        %v397 = vpop.f32.mrf.mxu0
        %v398 = vadd.f32 %v371, %v397
        %399 = vdwg.mxu0
        %v400 = vld [vmem:[%s351] sm:$0x1]
        %vm401 = vnez %v400
        %v402 = vsel %vm401, 16843009, 0
        %v403 = vunpack.c.0.s8 %v402
        %vm404 = vcmp.ne.s32.totalorder %v403, 0
        %v405 = vsel %vm404, 1, 0
        %v406 = vperm.slane %v405, 0
        %vm407 = vcmp.eq.s32.totalorder %v406, 1
        %v408 = vsel %vm407, -inf, %v398
        %vm409 = vcmask 58368
        %410 = vst.msk [vmem:[%s340] sm:$0x3] %vm409, %v408
        %v411 = vsel %vm409, %v408, -inf
        %412 = vmax.xlane.f32.xlu0 %v411
        %v413 = vpop.xlane.xlu0 %412
        %v414 = vsub.f32 %v408, %v413
        %v415 = vmul.f32 %v414, 1.442695
        %v416 = vpow.pop %v415
        %v417 = vsel %vm409, %v416, 0.0
        %418 = vadd.xlane.f32.xlu0 %v417
        %v419 = vpop.xlane.xlu0 %418
        %v420 = vlog2.pop %v419
        %v421 = vmul.f32 %v420, 0.6931472
        %v422 = vsub.f32 %v414, %v421
        %s423 = smul.u32 %s27, 2
        %vm424 = vcmp.eq.s32.totalorder %v366, 0
        %s425 = sld [smem:[#allocation6 + %s423]]
        %s426 = sld [smem:[#allocation7 + %s423]]
        %v427 = vstv %s425
        %v428 = vstv %s426
        %v429 = vsel %vm424, %v427, %v428
        %vm430 = vcmp.eq.s32.totalorder %v364, %v429
        %v431 = vsel %vm430, %v422, 0.0
        %v432 = vsel %vm409, %v431, 0.0
        %433 = vadd.xlane.f32.xlu0 %v432
        %v434 = vpop.xlane.xlu0 %433
        %vm435 = vcmask 1041408
        %v436 = vsel %vm435, %v434, 0.0
        %v437 = vrot.slane %v436, 4
        %v438 = vadd.f32 %v436, %v437
        %v439 = vrot.slane %v438, 2
        %v440 = vadd.f32 %v438, %v439
        %v441 = vrot.slane %v440, 1
        %v442 = vadd.f32 %v440, %v441
        %v443 = vmul.f32 %v442, -0.5
        %vm444 = vcmask 0
        %445 = vst.msk [vmem:[%s357] sm:$0x1] %vm444, %v443
        %s446 = scalar_lea.vmem %s296, 8 [#allocation2]
        %v447 = vld [vmem:[%s446] sm:$0xff]
        %v449 = vsel %vm373, %v447, 0
        %451 = vmatpush.xpose.msra.mxu0 0.0
        %452 = vmatpush.xpose.msra.mxu0 0.0
        %453 = vmatpush.xpose.msra.mxu0 0.0
        %454 = vmatpush.xpose.msra.mxu0 0.0
        %455 = vmatpush.xpose.msra.mxu0 0.0
        %456 = vmatpush.xpose.msra.mxu0 0.0
        %457 = vmatpush.xpose.msra.mxu0 0.0
        %458 = vmatpush.xpose.msra.mxu0 0.0
        %459 = vmatpush.xpose.msra.mxu0 0.0
        %460 = vmatpush.xpose.msra.mxu0 0.0
        %461 = vmatpush.xpose.msra.mxu0 0.0
        %462 = vmatpush.xpose.msra.mxu0 0.0
        %463 = vmatpush.xpose.msra.mxu0 0.0
        %464 = vmatpush.xpose.msra.mxu0 0.0
        %465 = vmatpush.xpose.msra.mxu0 0.0
        %466 = vmatpush.xpose.msra.mxu0 %v449
        %467 = vmatmul.f32.gmra.mxu0 %v375
        %v468 = vpop.f32.mrf.mxu0
        %v469 = vadd.f32 %v371, %v468
        %470 = vdwg.mxu0
        %s471 = scalar_lea.vmem %s351, 1
        %v472 = vld [vmem:[%s471] sm:$0x1]
        %vm473 = vnez %v472
        %v474 = vsel %vm473, 16843009, 0
        %v475 = vunpack.c.0.s8 %v474
        %vm476 = vcmp.ne.s32.totalorder %v475, 0
        %v477 = vsel %vm476, 1, 0
        %v478 = vperm.slane %v477, 0
        %vm479 = vcmp.eq.s32.totalorder %v478, 1
        %v480 = vsel %vm479, -inf, %v469
        %s481 = scalar_lea.vmem %s340, 2 [#allocation9]
        %482 = vst.msk [vmem:[%s481] sm:$0x3] %vm409, %v480
        %v483 = vsel %vm409, %v480, -inf
        %484 = vmax.xlane.f32.xlu0 %v483
        %v485 = vpop.xlane.xlu0 %484
        %v486 = vsub.f32 %v480, %v485
        %v487 = vmul.f32 %v486, 1.442695
        %v488 = vpow.pop %v487
        %v489 = vsel %vm409, %v488, 0.0
        %490 = vadd.xlane.f32.xlu0 %v489
        %v491 = vpop.xlane.xlu0 %490
        %v492 = vlog2.pop %v491
        %v493 = vmul.f32 %v492, 0.6931472
        %v494 = vsub.f32 %v486, %v493
        %s495 = sadd.s32 %s423, 1
        %s496 = sld [smem:[#allocation6 + %s495]]
        %s497 = sld [smem:[#allocation7 + %s495]]
        %v498 = vstv %s496
        %v499 = vstv %s497
        %v500 = vsel %vm424, %v498, %v499
        %vm501 = vcmp.eq.s32.totalorder %v364, %v500
        %v502 = vsel %vm501, %v494, 0.0
        %v503 = vsel %vm409, %v502, 0.0
        %504 = vadd.xlane.f32.xlu0 %v503
        %v505 = vpop.xlane.xlu0 %504
        %v506 = vsel %vm435, %v505, 0.0
        %v507 = vrot.slane %v506, 4
        %v508 = vadd.f32 %v506, %v507
        %v509 = vrot.slane %v508, 2
        %v510 = vadd.f32 %v508, %v509
        %v511 = vrot.slane %v510, 1
        %v512 = vadd.f32 %v510, %v511
        %v513 = vmul.f32 %v512, -0.5
        %s514 = scalar_lea.vmem %s357, 1
        %515 = vst.msk [vmem:[%s514] sm:$0x1] %vm444, %v513
        %s516 = sand.u32 %s171, 1
        %s517 = scalar_lea.sflag [#allocation4], %s516
        %s518 = sand.u32 %s171, 1
        %s519 = smul.addr %s518, 4
        %s520 = scalar_lea.vmem [#allocation9], %s519
        %s521 = smul.u32 2, %s27
        %p522 = scmp.lt.s32.totalorder %s521, 3
        %s523 = scalar_select %p522, %s521, 3
        %s524 = scalar_lea.vmem %s7, %s523
        // Predicated region
        $region57: #{tpu_custom_call.1} parent=43 // pred_check
          %p525 = pneg %p181
        $region58: #{tpu_custom_call.1} parent=43 // pred_check_branch
          %527 = sbr.rel (%p525) target = $region60
        $region59: #{tpu_custom_call.1} parent=43 // pred_region
          %s528 = smul.u32 2, %s27
          %530 = vsyncadd %s517, 0
          %s531 = smul.addr %s528, 2
          %s532 = scalar_lea.hbm %s6, %s531
          %s533 = sshll.u32 %s520, 4
          %s534 = int_to_ptr.vmem [resolvable:$true] %s533
          %s535 = sshll.u32 %s532, 4
          %s536 = int_to_ptr.hbm [resolvable:$true] %s535
          %541 = dma.vmem_to_hbm [thread:$0]  %s534, 64, %s536, %s517, 32, 32, 2
        $region60: #{tpu_custom_call.1} parent=43 // pred_fallthru
          _
        // Predicated region
        $region61: #{tpu_custom_call.1} parent=43 // pred_check
          %p542 = pneg %p207
        $region62: #{tpu_custom_call.1} parent=43 // pred_check_branch
          %544 = sbr.rel (%p542) target = $region64
        $region63: #{tpu_custom_call.1} parent=43 // pred_region
          %s545 = smul.u32 2, %s27
        $region64: #{tpu_custom_call.1} parent=43 // pred_fallthru
          _
      $region44: #{tpu_custom_call.1} parent=5 // pred_fallthru
        _
      %p546 = scmp.le.s32.totalorder 2, %s22
      // Predicated region
      $region65: #{tpu_custom_call.1} parent=5 // pred_check
        %p547 = pneg %p546
      $region66: #{tpu_custom_call.1} parent=5 // pred_check_branch
        %549 = sbr.rel (%p547) target = $region68
      $region67: #{tpu_custom_call.1} parent=5 // pred_region
        %s550 = ssub.s32 %s22, 2
        // Predicated region
        $region69: #{tpu_custom_call.1} parent=67 // pred_check
          %p551 = pneg %p187
        $region70: #{tpu_custom_call.1} parent=67 // pred_check_branch
          %553 = sbr.rel (%p551) target = $region72
        $region71: #{tpu_custom_call.1} parent=67 // pred_region
          %s554 = sand.u32 %s172, 1
          %s555 = scalar_lea.sflag [#allocation4], %s554
          %s556 = sand.u32 %s172, 1
          %s557 = smul.addr %s556, 4
          %s558 = scalar_lea.vmem [#allocation9], %s557
          %560 = dma.done %s555, 64
        $region72: #{tpu_custom_call.1} parent=67 // pred_fallthru
          _
        // Predicated region
        $region73: #{tpu_custom_call.1} parent=67 // pred_check
          %p561 = pneg %p213
        $region74: #{tpu_custom_call.1} parent=67 // pred_check_branch
          %563 = sbr.rel (%p561) target = $region76
        $region75: #{tpu_custom_call.1} parent=67 // pred_region
          %s564 = smul.u32 2, %s28
          %p565 = scmp.lt.s32.totalorder %s564, 3
          %s566 = scalar_select %p565, %s564, 3
          %s567 = scalar_lea.vmem %s7, %s566
        $region76: #{tpu_custom_call.1} parent=67 // pred_fallthru
          _
      $region68: #{tpu_custom_call.1} parent=5 // pred_fallthru
        _
    $region6: #{tpu_custom_call.1} parent=1 // loop_footer
      %s26 = sadd.s32 1, %s22
    $region7: #{tpu_custom_call.1} parent=1 // loop_footer_branch
      %21 = sbr.rel target = $region3
    $region8: #{tpu_custom_call.1} parent=1 // loop_exit
      _
    %568 = vsyncpa [#allocation3], 1
    %s569 = scalar_lea.sflag [#allocation3], 1
    %570 = vsyncpa %s569, 1
    %571 = vsyncpa [#allocation4], 1
    %s572 = scalar_lea.sflag [#allocation4], 1
    %573 = vsyncpa %s572, 1
    %574 = vsyncpa [#allocation5], 1
    %s575 = scalar_lea.sflag [#allocation5], 1
    %576 = vsyncpa %s575, 1
    %577 = vsyncpa [#allocation8], 1

</llo_original>
